<compile_context>
chip_gen: v7x
topology: tpu7x:2x2x1
jax: 0.10.0
libtpu: 0.0.40
codegen_flags: <defaults>
</compile_context>

<pallas_src>
from functools import partial

import numpy as np
import jax
import jax.numpy as jnp
from jax.experimental import pallas as pl
from jax.experimental.pallas import tpu as pltpu

F32 = jnp.float32

_TILE_N = 256   # node-tile size (sublane axis); fits comfortably in the
                # default scoped VMEM even double-buffered (v5e/v6e/v7x).
_GB = 128       # graph-block size (lane-dense graph axis)


def _round_up(x, m):
    return (x + m - 1) // m * m


# ----------------------------- fused Pallas kernel -----------------------------

def _attn_pool_kernel(x_ref, agg_ref, w_ref, b_ref, bcol_ref, o_ref,
                      m_sc, l_sc, acc_sc):
    """Online segment-softmax + weighted pool over node tiles.

    grid = (graph_blocks [parallel], node_tiles [arbitrary/reduction]).
    Scratch: m_sc (1,G) running max, l_sc (1,G) running denom,
             acc_sc (H,G) running weighted sum (graph axis on lanes).
    """
    gb = pl.program_id(0)              # graph-block index (parallel axis)
    k = pl.program_id(1)               # node-tile index (reduction axis)
    nk = pl.num_programs(1)

    @pl.when(k == 0)
    def _():
        m_sc[...] = jnp.full_like(m_sc, -1e30)
        l_sc[...] = jnp.zeros_like(l_sc)
        acc_sc[...] = jnp.zeros_like(acc_sc)

    x = x_ref[...]                     # (T, H)  f32
    agg = agg_ref[...]                 # (T, H)  f32
    root_w = w_ref[0:1, :]             # (1, H)
    rel_w = w_ref[1:2, :]              # (1, H)
    rel_b = b_ref[0]                   # scalar (SMEM)

    # GraphConv(hidden, 1) as a fused VPU lane-reduction: no (H,1) MXU matmul,
    # no width-1 store -- the score never leaves vregs.
    s = jnp.sum(x * root_w + agg * rel_w, axis=-1, keepdims=True) + rel_b   # (T,1)

    t = x.shape[0]
    g = o_ref.shape[1]
    bid = bcol_ref[...]                                            # (T,1) int32, -1 = pad
    col = jax.lax.broadcasted_iota(jnp.int32, (t, g), 1) + gb * g
    mt = bid == col                                                # (T,G) node->graph one-hot
    mtf = mt.astype(jnp.float32)
    valid = (bid >= 0).astype(jnp.float32)                         # (T,1) pad-row mask

    # --- online softmax max update (per graph column) ---
    neg = jnp.float32(-1e30)
    m_prev = m_sc[...]                                             # (1,G)
    m_tile = jnp.max(jnp.where(mt, s, neg), axis=0, keepdims=True)  # (1,G)
    m_new = jnp.maximum(m_prev, m_tile)
    alpha = jnp.exp(m_prev - m_new)                                # (1,G) rescale factor
    m_sc[...] = m_new

    # scatter the per-graph running max back to nodes on the MXU (idle slack).
    m_node = jax.lax.dot_general(mtf, m_new, (((1,), (1,)), ((), ())),
                                 preferred_element_type=jnp.float32)   # (T,1)
    # min(.,0) guards nodes whose graph is outside this graph block / pad rows.
    e = jnp.exp(jnp.minimum(s - m_node, 0.0)) * valid                  # (T,1)

    # pool this tile on the MXU: contract over the node (sublane) axis.
    num_c = jax.lax.dot_general(x * e, mtf, (((0,), (0,)), ((), ())),
                                preferred_element_type=jnp.float32)    # (H,G)
    den_c = jax.lax.dot_general(e, mtf, (((0,), (0,)), ((), ())),
                                preferred_element_type=jnp.float32)    # (1,G)

    acc_sc[...] = alpha * acc_sc[...] + num_c
    l_sc[...] = alpha * l_sc[...] + den_c

    @pl.when(k == nk - 1)
    def _():
        d = l_sc[...] + 1e-16
        inv = pl.reciprocal(d, approx=True)      # EUP (free slot)
        inv = inv * (2.0 - d * inv)              # one Newton step -> f32 accuracy
        o_ref[...] = acc_sc[...] * inv           # (H, G): lane-dense store


# ------------------------------- model forward -------------------------------

@partial(jax.jit, static_argnames=("num_graphs",))
def global_attention_pool(params, x, edge_index, batch, *, num_graphs):
    """GlobalAttentionPool.forward(x, edge_index, batch) -> (num_graphs, hidden)."""
    x = x.astype(F32)
    n, h = x.shape

    # TODO(synk): GraphConv's ragged neighbor gather + scatter-add
    # (agg[i] = sum_{j->i} x[j]) stays in plain JAX -- no clean static-BlockSpec
    # Pallas equivalent for arbitrary edge lists at these sizes.
    agg = jax.ops.segment_sum(x[edge_index[0]], edge_index[1], num_segments=n)

    tile_n = min(_TILE_N, _round_up(max(n, 1), 8))
    np_ = _round_up(n, tile_n)
    bp = _round_up(max(num_graphs, 1), _GB)
    n_gb = bp // _GB
    n_nt = np_ // tile_n

    # TODO(synk): for very large N these pads add one extra HBM pass; a ragged
    # last tile guarded purely by the batch-id mask would avoid them.
    pad = np_ - n
    x_p = jnp.pad(x, ((0, pad), (0, 0)))
    agg_p = jnp.pad(agg, ((0, pad), (0, 0)))
    bcol = jnp.pad(batch.astype(jnp.int32), ((0, pad),),
                   constant_values=-1).reshape(np_, 1)

    w2 = jnp.stack([params["root_w"].reshape(-1),
                    params["rel_w"].reshape(-1)]).astype(F32)       # (2, H)
    b1 = params["rel_b"].reshape(1).astype(F32)                     # (1,)

    out_t = pl.pallas_call(
        _attn_pool_kernel,
        out_shape=jax.ShapeDtypeStruct((h, bp), F32),               # graph axis lane-dense
        grid_spec=pltpu.PrefetchScalarGridSpec(
            num_scalar_prefetch=0,
            grid=(n_gb, n_nt),                                      # reduction axis last
            in_specs=[
                pl.BlockSpec((tile_n, h), lambda gb, k: (k, 0)),    # x
                pl.BlockSpec((tile_n, h), lambda gb, k: (k, 0)),    # agg
                pl.BlockSpec((2, h), lambda gb, k: (0, 0)),         # [root_w; rel_w]
                pl.BlockSpec(memory_space=pltpu.MemorySpace.SMEM),  # rel_b scalar
                pl.BlockSpec((tile_n, 1), lambda gb, k: (k, 0)),    # batch ids
            ],
            out_specs=pl.BlockSpec((h, _GB), lambda gb, k: (0, gb)),
            scratch_shapes=[
                pltpu.VMEM((1, _GB), F32),      # running per-graph max
                pltpu.VMEM((1, _GB), F32),      # running softmax denominator
                pltpu.VMEM((h, _GB), F32),      # running weighted sum
            ],
        ),
        compiler_params=pltpu.CompilerParams(
            dimension_semantics=("parallel", "arbitrary")),
    )(x_p, agg_p, w2, b1, bcol)

    return out_t[:, :num_graphs].T


# ------------------------------ pure-JAX reference ------------------------------

def _reference(params, x, edge_index, batch, num_graphs):
    n = x.shape[0]
    agg = jax.ops.segment_sum(x[edge_index[0]], edge_index[1], num_segments=n)
    x_conv = agg @ params["rel_w"] + params["rel_b"] + x @ params["root_w"]
    m = jax.ops.segment_max(x_conv, batch, num_segments=num_graphs)
    e = jnp.exp(x_conv - m[batch])
    ssum = jax.ops.segment_sum(e, batch, num_segments=num_graphs)
    scores = e / (ssum[batch] + 1e-16)
    return jax.ops.segment_sum(x * scores, batch, num_segments=num_graphs)


# ------------------------------ synthetic inputs ------------------------------

def _make_batch(node_counts):
    """Batch of bidirectional path graphs: edge_index (2,E), batch (N,), N."""
    eis, batch = [], []
    off = 0
    for gi, nc in enumerate(node_counts):
        src, dst = [], []
        for i in range(nc - 1):
            src += [i, i + 1]
            dst += [i + 1, i]
        eis.append(np.stack([np.asarray(src, np.int32) + off,
                             np.asarray(dst, np.int32) + off]))
        batch += [gi] * nc
        off += nc
    edge_index = np.concatenate(eis, axis=1).astype(np.int32)
    return jnp.asarray(edge_index), jnp.asarray(np.asarray(batch, np.int32)), off


# ----------------------------------- main -----------------------------------

if __name__ == "__main__":
    hidden = 32

    def run_case(node_counts):
        num_graphs = len(node_counts)
        edge_index, batch, n_nodes = _make_batch(node_counts)
        key = jax.random.PRNGKey(0)
        kx, kr, kb, ko = jax.random.split(key, 4)
        x = jax.random.normal(kx, (n_nodes, hidden), F32)
        params = dict(
            rel_w=0.1 * jax.random.normal(kr, (hidden, 1), F32),   # lin_rel weight
            rel_b=0.1 * jax.random.normal(kb, (1,), F32),          # lin_rel bias
            root_w=0.1 * jax.random.normal(ko, (hidden, 1), F32),  # lin_root (no bias)
        )
        gx = global_attention_pool(params, x, edge_index, batch,
                                   num_graphs=num_graphs)
        gx = jax.block_until_ready(gx)
        ref = _reference(params, x, edge_index, batch, num_graphs)
        assert gx.shape == (num_graphs, hidden)
        assert bool(jnp.all(jnp.isfinite(gx)))
        np.testing.assert_allclose(np.asarray(gx), np.asarray(ref),
                                   rtol=1e-4, atol=1e-5)

    run_case([5, 6])        # small case: 11 nodes, 2 graphs, single node tile
    run_case([7] * 46)      # 322 nodes, 46 graphs: 2 node tiles, a graph spans
                            # the tile boundary -> exercises the online softmax
    print("KERNEL_OK")
</pallas_src>

<mosaic_0001>
module attributes {stable_mosaic.version = 11 : i64} {
  func.func @_attn_pool_kernel(%arg0: i32, %arg1: i32, %arg2: memref<16x32xf32, #tpu.memory_space<vmem>>, %arg3: memref<16x32xf32, #tpu.memory_space<vmem>>, %arg4: memref<2x32xf32, #tpu.memory_space<vmem>>, %arg5: memref<1xf32, #tpu.memory_space<smem>>, %arg6: memref<16x1xi32, #tpu.memory_space<vmem>>, %arg7: memref<32x128xf32, #tpu.memory_space<vmem>>, %arg8: memref<1x128xf32, #tpu.memory_space<vmem>>, %arg9: memref<1x128xf32, #tpu.memory_space<vmem>>, %arg10: memref<32x128xf32, #tpu.memory_space<vmem>>) attributes {dimension_semantics = [#tpu.dimension_semantics<parallel>, #tpu.dimension_semantics<arbitrary>], iteration_bounds = array<i64: 1, 1>, scalar_prefetch = 0 : i64, scratch_operands = 3 : i64, tpu.core_type = #tpu.core_type<tc>, window_params = [{transform_indices = @transform_0, window_bounds = array<i64: 16, 32>}, {transform_indices = @transform_1, window_bounds = array<i64: 16, 32>}, {pipeline_mode = #tpu.pipeline_mode<synchronous>, transform_indices = @transform_2, window_bounds = array<i64: 2, 32>}, {transform_indices = @transform_3, window_bounds = array<i64: 1>}, {transform_indices = @transform_4, window_bounds = array<i64: 16, 1>}, {transform_indices = @transform_5, window_bounds = array<i64: 32, 128>}]} {
    %c0_i32 = arith.constant 0 : i32
    %0 = arith.cmpi eq, %arg1, %c0_i32 : i32
    %1 = arith.extui %0 : i1 to i32
    %c0_i32_0 = arith.constant 0 : i32
    %2 = arith.cmpi ne, %1, %c0_i32_0 : i32
    scf.if %2 {
      %cst_31 = arith.constant -1.000000e+30 : f32
      %63 = vector.broadcast %cst_31 : f32 to vector<1x128xf32>
      %c0_32 = arith.constant 0 : index
      %c0_33 = arith.constant 0 : index
      %64 = vector.load %arg8[%c0_32, %c0_33] : memref<1x128xf32, #tpu.memory_space<vmem>>, vector<1x128xf32>
      tpu.vector_store %arg8[%c0_32, %c0_33], %63 {strides = array<i32>} : memref<1x128xf32, #tpu.memory_space<vmem>>, vector<1x128xf32>,
      %cst_34 = arith.constant 0.000000e+00 : f32
      %65 = vector.broadcast %cst_34 : f32 to vector<1x128xf32>
      %c0_35 = arith.constant 0 : index
      %c0_36 = arith.constant 0 : index
      %66 = vector.load %arg9[%c0_35, %c0_36] : memref<1x128xf32, #tpu.memory_space<vmem>>, vector<1x128xf32>
      tpu.vector_store %arg9[%c0_35, %c0_36], %65 {strides = array<i32>} : memref<1x128xf32, #tpu.memory_space<vmem>>, vector<1x128xf32>,
      %cst_37 = arith.constant 0.000000e+00 : f32
      %67 = vector.broadcast %cst_37 : f32 to vector<32x128xf32>
      %c0_38 = arith.constant 0 : index
      %c0_39 = arith.constant 0 : index
      %68 = vector.load %arg10[%c0_38, %c0_39] : memref<32x128xf32, #tpu.memory_space<vmem>>, vector<32x128xf32>
      tpu.vector_store %arg10[%c0_38, %c0_39], %67 {strides = array<i32>} : memref<32x128xf32, #tpu.memory_space<vmem>>, vector<32x128xf32>,
    } else {
    }
    %c0 = arith.constant 0 : index
    %c0_1 = arith.constant 0 : index
    %3 = vector.load %arg2[%c0, %c0_1] : memref<16x32xf32, #tpu.memory_space<vmem>>, vector<16x32xf32>
    %c0_2 = arith.constant 0 : index
    %c0_3 = arith.constant 0 : index
    %4 = vector.load %arg3[%c0_2, %c0_3] : memref<16x32xf32, #tpu.memory_space<vmem>>, vector<16x32xf32>
    %c0_4 = arith.constant 0 : index
    %c0_5 = arith.constant 0 : index
    %5 = vector.load %arg4[%c0_4, %c0_5] : memref<2x32xf32, #tpu.memory_space<vmem>>, vector<1x32xf32>
    %c1 = arith.constant 1 : index
    %c0_6 = arith.constant 0 : index
    %6 = vector.load %arg4[%c1, %c0_6] : memref<2x32xf32, #tpu.memory_space<vmem>>, vector<1x32xf32>
    %c0_7 = arith.constant 0 : index
    %7 = memref.load %arg5[%c0_7] : memref<1xf32, #tpu.memory_space<smem>>
    %8 = vector.broadcast %5 : vector<1x32xf32> to vector<16x32xf32>
    %9 = arith.mulf %3, %8 : vector<16x32xf32>
    %10 = vector.broadcast %6 : vector<1x32xf32> to vector<16x32xf32>
    %11 = arith.mulf %4, %10 : vector<16x32xf32>
    %12 = arith.addf %9, %11 : vector<16x32xf32>
    %cst = arith.constant dense<0.000000e+00> : vector<16xf32>
    %13 = vector.multi_reduction <add>, %12, %cst [1] : vector<16x32xf32> to vector<16xf32>
    %14 = vector.shape_cast %13 : vector<16xf32> to vector<16x1xf32>
    %15 = vector.broadcast %7 : f32 to vector<16x1xf32>
    %16 = arith.addf %14, %15 : vector<16x1xf32>
    %c0_8 = arith.constant 0 : index
    %c0_9 = arith.constant 0 : index
    %17 = vector.load %arg6[%c0_8, %c0_9] : memref<16x1xi32, #tpu.memory_space<vmem>>, vector<16x1xi32>
    %18 = tpu.iota {dimensions = array<i32: 1>} : vector<16x128xi32>
    %c128_i32 = arith.constant 128 : i32
    %19 = arith.muli %arg0, %c128_i32 : i32
    %20 = vector.broadcast %19 : i32 to vector<16x128xi32>
    %21 = arith.addi %18, %20 : vector<16x128xi32>
    %22 = vector.broadcast %17 : vector<16x1xi32> to vector<16x128xi32>
    %23 = arith.cmpi eq, %22, %21 : vector<16x128xi32>
    %24 = arith.extui %23 : vector<16x128xi1> to vector<16x128xi32>
    %25 = arith.sitofp %24 : vector<16x128xi32> to vector<16x128xf32>
    %c0_i32_10 = arith.constant 0 : i32
    %26 = vector.broadcast %c0_i32_10 : i32 to vector<16x1xi32>
    %27 = arith.cmpi sge, %17, %26 : vector<16x1xi32>
    %28 = arith.extui %27 : vector<16x1xi1> to vector<16x1xi32>
    %29 = arith.sitofp %28 : vector<16x1xi32> to vector<16x1xf32>
    %c0_11 = arith.constant 0 : index
    %c0_12 = arith.constant 0 : index
    %30 = vector.load %arg8[%c0_11, %c0_12] : memref<1x128xf32, #tpu.memory_space<vmem>>, vector<1x128xf32>
    %cst_13 = arith.constant -1.000000e+30 : f32
    %31 = vector.shape_cast %16 : vector<16x1xf32> to vector<16x1xf32>
    %32 = vector.broadcast %31 : vector<16x1xf32> to vector<16x128xf32>
    %33 = vector.broadcast %cst_13 : f32 to vector<16x128xf32>
    %34 = arith.select %23, %32, %33 : vector<16x128xi1>, vector<16x128xf32>
    %cst_14 = arith.constant dense<0xFF800000> : vector<128xf32>
    %35 = vector.multi_reduction <maximumf>, %34, %cst_14 [0] : vector<16x128xf32> to vector<128xf32>
    %36 = vector.shape_cast %35 : vector<128xf32> to vector<1x128xf32>
    %37 = arith.maximumf %30, %36 : vector<1x128xf32>
    %38 = arith.subf %30, %37 : vector<1x128xf32>
    %39 = math.exp %38 : vector<1x128xf32>
    %c0_15 = arith.constant 0 : index
    %c0_16 = arith.constant 0 : index
    %40 = vector.load %arg8[%c0_15, %c0_16] : memref<1x128xf32, #tpu.memory_space<vmem>>, vector<1x128xf32>
    tpu.vector_store %arg8[%c0_15, %c0_16], %37 {strides = array<i32>} : memref<1x128xf32, #tpu.memory_space<vmem>>, vector<1x128xf32>,
    %cst_17 = arith.constant dense<0.000000e+00> : vector<16x1xf32>
    %41 = tpu.matmul %25, %37, %cst_17 {dimension_numbers = #tpu.dot_dimension_numbers<[1], [1], [0], [0], [0, 0, 1, 0], [], []>} : vector<16x128xf32>, vector<1x128xf32>, vector<16x1xf32> -> vector<16x1xf32>
    %42 = arith.subf %16, %41 : vector<16x1xf32>
    %cst_18 = arith.constant 0.000000e+00 : f32
    %43 = vector.broadcast %cst_18 : f32 to vector<16x1xf32>
    %44 = arith.minimumf %42, %43 : vector<16x1xf32>
    %45 = math.exp %44 : vector<16x1xf32>
    %46 = arith.mulf %45, %29 : vector<16x1xf32>
    %47 = vector.broadcast %46 : vector<16x1xf32> to vector<16x32xf32>
    %48 = arith.mulf %3, %47 : vector<16x32xf32>
    %cst_19 = arith.constant dense<0.000000e+00> : vector<32x128xf32>
    %49 = tpu.matmul %48, %25, %cst_19 {dimension_numbers = #tpu.dot_dimension_numbers<[0], [0], [1], [1], [0, 1, 1, 1], [], []>} : vector<16x32xf32>, vector<16x128xf32>, vector<32x128xf32> -> vector<32x128xf32>
    %cst_20 = arith.constant dense<0.000000e+00> : vector<1x128xf32>
    %50 = tpu.matmul %46, %25, %cst_20 {dimension_numbers = #tpu.dot_dimension_numbers<[0], [0], [1], [1], [0, 1, 1, 1], [], []>} : vector<16x1xf32>, vector<16x128xf32>, vector<1x128xf32> -> vector<1x128xf32>
    %c0_21 = arith.constant 0 : index
    %c0_22 = arith.constant 0 : index
    %51 = vector.load %arg10[%c0_21, %c0_22] : memref<32x128xf32, #tpu.memory_space<vmem>>, vector<32x128xf32>
    %52 = vector.broadcast %39 : vector<1x128xf32> to vector<32x128xf32>
    %53 = arith.mulf %52, %51 : vector<32x128xf32>
    %54 = arith.addf %53, %49 : vector<32x128xf32>
    %c0_23 = arith.constant 0 : index
    %c0_24 = arith.constant 0 : index
    %55 = vector.load %arg10[%c0_23, %c0_24] : memref<32x128xf32, #tpu.memory_space<vmem>>, vector<32x128xf32>
    tpu.vector_store %arg10[%c0_23, %c0_24], %54 {strides = array<i32>} : memref<32x128xf32, #tpu.memory_space<vmem>>, vector<32x128xf32>,
    %c0_25 = arith.constant 0 : index
    %c0_26 = arith.constant 0 : index
    %56 = vector.load %arg9[%c0_25, %c0_26] : memref<1x128xf32, #tpu.memory_space<vmem>>, vector<1x128xf32>
    %57 = arith.mulf %39, %56 : vector<1x128xf32>
    %58 = arith.addf %57, %50 : vector<1x128xf32>
    %c0_27 = arith.constant 0 : index
    %c0_28 = arith.constant 0 : index
    %59 = vector.load %arg9[%c0_27, %c0_28] : memref<1x128xf32, #tpu.memory_space<vmem>>, vector<1x128xf32>
    tpu.vector_store %arg9[%c0_27, %c0_28], %58 {strides = array<i32>} : memref<1x128xf32, #tpu.memory_space<vmem>>, vector<1x128xf32>,
    %c0_i32_29 = arith.constant 0 : i32
    %60 = arith.cmpi eq, %arg1, %c0_i32_29 : i32
    %61 = arith.extui %60 : i1 to i32
    %c0_i32_30 = arith.constant 0 : i32
    %62 = arith.cmpi ne, %61, %c0_i32_30 : i32
    scf.if %62 {
      %c0_31 = arith.constant 0 : index
      %c0_32 = arith.constant 0 : index
      %63 = vector.load %arg9[%c0_31, %c0_32] : memref<1x128xf32, #tpu.memory_space<vmem>>, vector<1x128xf32>
      %cst_33 = arith.constant 1.000000e-16 : f32
      %64 = vector.broadcast %cst_33 : f32 to vector<1x128xf32>
      %65 = arith.addf %63, %64 : vector<1x128xf32>
      %66 = tpu.reciprocal %65 {approx = true} : vector<1x128xf32> -> vector<1x128xf32>
      %67 = arith.mulf %65, %66 : vector<1x128xf32>
      %cst_34 = arith.constant 2.000000e+00 : f32
      %68 = vector.broadcast %cst_34 : f32 to vector<1x128xf32>
      %69 = arith.subf %68, %67 : vector<1x128xf32>
      %70 = arith.mulf %66, %69 : vector<1x128xf32>
      %c0_35 = arith.constant 0 : index
      %c0_36 = arith.constant 0 : index
      %71 = vector.load %arg10[%c0_35, %c0_36] : memref<32x128xf32, #tpu.memory_space<vmem>>, vector<32x128xf32>
      %72 = vector.broadcast %70 : vector<1x128xf32> to vector<32x128xf32>
      %73 = arith.mulf %71, %72 : vector<32x128xf32>
      %c0_37 = arith.constant 0 : index
      %c0_38 = arith.constant 0 : index
      %74 = vector.load %arg7[%c0_37, %c0_38] : memref<32x128xf32, #tpu.memory_space<vmem>>, vector<32x128xf32>
      tpu.vector_store %arg7[%c0_37, %c0_38], %73 {strides = array<i32>} : memref<32x128xf32, #tpu.memory_space<vmem>>, vector<32x128xf32>,
    } else {
    }
    return
  }
  func.func @transform_0(%arg0: i32, %arg1: i32) -> (i32, i32) {
    %c0_i32 = arith.constant 0 : i32
    %c0_i32_0 = arith.constant 0 : i32
    return %arg1, %c0_i32 : i32, i32
  }
  func.func @transform_1(%arg0: i32, %arg1: i32) -> (i32, i32) {
    %c0_i32 = arith.constant 0 : i32
    %c0_i32_0 = arith.constant 0 : i32
    return %arg1, %c0_i32 : i32, i32
  }
  func.func @transform_2(%arg0: i32, %arg1: i32) -> (i32, i32) {
    %c0_i32 = arith.constant 0 : i32
    %c0_i32_0 = arith.constant 0 : i32
    %c0_i32_1 = arith.constant 0 : i32
    return %c0_i32, %c0_i32_0 : i32, i32
  }
  func.func @transform_3(%arg0: i32, %arg1: i32) -> i32 {
    %c0_i32 = arith.constant 0 : i32
    %c0_i32_0 = arith.constant 0 : i32
    return %c0_i32 : i32
  }
  func.func @transform_4(%arg0: i32, %arg1: i32) -> (i32, i32) {
    %c0_i32 = arith.constant 0 : i32
    %c0_i32_0 = arith.constant 0 : i32
    return %arg1, %c0_i32 : i32, i32
  }
  func.func @transform_5(%arg0: i32, %arg1: i32) -> (i32, i32) {
    %c0_i32 = arith.constant 0 : i32
    %c0_i32_0 = arith.constant 0 : i32
    return %c0_i32, %arg0 : i32, i32
  }
}

</mosaic_0001>

<llo_original>
// kernel: global_attention_pool.1
$region0: #{global_attention_pool.1}
  #allocation0 [shape = 'u32[]', space=smem, size = 0x4, offset = 0x4, fixed_abs, tag = 'smem constant byte address 0x4 - core index']
  #allocation1 [shape = 'u32[144,128]{1,0:T(1,128)}', space=vmem, size = 0x12000, scoped, tag = 'internal scratch']
  #allocation2 [shape = 'f32[1,128]{1,0:T(1,128)}', space=vmem, size = 0x200, scoped, tag = 'scratch operand']
  #allocation3 [shape = 'f32[1,128]{1,0:T(1,128)}', space=vmem, size = 0x200, scoped, tag = 'scratch operand']
  #allocation4 [shape = 'f32[32,128]{1,0:T(8,128)}', space=vmem, size = 0x4000, scoped, tag = 'scratch operand']
  #allocation5 [shape = 'f32[1]{0:T(128)S(6)}', space=smem, size = 0x200, scoped, tag = 'scoped memory for global_attention_pool.1']
  %s0 = inlined_call_operand.vmem [shape: f32[16,32], index: 0, kind: input, shape index: {}]
  %s1 = inlined_call_operand.vmem [shape: f32[16,32], index: 1, kind: input, shape index: {}]
  %s2 = inlined_call_operand.vmem [shape: f32[2,32], index: 2, kind: input, shape index: {}]
  %s3 = inlined_call_operand.<no memory space> [shape: f32[1], index: 3, kind: input, shape index: {}]
  %s4 = inlined_call_operand.vmem [shape: s32[16,1], index: 4, kind: input, shape index: {}]
  %s5 = inlined_call_operand.vmem [shape: f32[32,128], index: 5, kind: output, shape index: {}]
  %s6 = sld [smem:[#allocation0]]
  $region38: #{global_attention_pool.1} parent=0
    _
  %s8 = ssub.s32 1, %s6
  %s9 = scalar_select 0, %s8, %s6
  %10 = sst [smem:[#allocation5]] %s3
  // Predicated region
  $region2: #{global_attention_pool.1} parent=0 // pred_check
    _
  $region3: #{global_attention_pool.1} parent=0 // pred_check_branch
    %12 = sbr.rel (0) target = $region5
  $region4: #{global_attention_pool.1} parent=0 // pred_region
    _
  $region5: #{global_attention_pool.1} parent=0 // pred_fallthru
    _
  // Predicated region
  $region6: #{global_attention_pool.1} parent=0 // pred_check
    _
  $region7: #{global_attention_pool.1} parent=0 // pred_check_branch
    %14 = sbr.rel (0) target = $region9
  $region8: #{global_attention_pool.1} parent=0 // pred_region
    _
  $region9: #{global_attention_pool.1} parent=0 // pred_fallthru
    _
  // Predicated region
  $region10: #{global_attention_pool.1} parent=0 // pred_check
    _
  $region11: #{global_attention_pool.1} parent=0 // pred_check_branch
    %16 = sbr.rel (0) target = $region13
  $region12: #{global_attention_pool.1} parent=0 // pred_region
    _
  $region13: #{global_attention_pool.1} parent=0 // pred_fallthru
    _
  // Predicated region
  $region14: #{global_attention_pool.1} parent=0 // pred_check
    _
  $region15: #{global_attention_pool.1} parent=0 // pred_check_branch
    %18 = sbr.rel (0) target = $region17
  $region16: #{global_attention_pool.1} parent=0 // pred_region
    _
  $region17: #{global_attention_pool.1} parent=0 // pred_fallthru
    _
  // Predicated region
  $region18: #{global_attention_pool.1} parent=0 // pred_check
    _
  $region19: #{global_attention_pool.1} parent=0 // pred_check_branch
    %20 = sbr.rel (0) target = $region21
  $region20: #{global_attention_pool.1} parent=0 // pred_region
    _
  $region21: #{global_attention_pool.1} parent=0 // pred_fallthru
    _
  %p21 = scmp.eq.s32.totalorder 0, 0
  // Predicated region
  $region22: #{global_attention_pool.1} parent=0 // pred_check
    %p22 = pneg %p21
  $region23: #{global_attention_pool.1} parent=0 // pred_check_branch
    %24 = sbr.rel (%p22) target = $region25
  $region24: #{global_attention_pool.1} parent=0 // pred_region
    %25 = vst [vmem:[#allocation2] sm:$0x1] -1e+30
    %26 = vst [vmem:[#allocation3] sm:$0x1] 0.0
    %27 = vst [vmem:[#allocation4] sm:$0xff] 0.0
    %28 = vst [vmem:[#allocation4 + $0x8] sm:$0xff] 0.0
    %29 = vst [vmem:[#allocation4 + $0x10] sm:$0xff] 0.0
    %30 = vst [vmem:[#allocation4 + $0x18] sm:$0xff] 0.0
  $region25: #{global_attention_pool.1} parent=0 // pred_fallthru
    _
  %v31 = vld [vmem:[%s0] sm:$0xff]
  %v32 = vld [vmem:[%s0 + $0x8] sm:$0xff]
  %v33 = vld [vmem:[%s1] sm:$0xff]
  %v34 = vld [vmem:[%s1 + $0x8] sm:$0xff]
  %v35 = vld [vmem:[%s2] sm:$0x1]
  %v36 = vld [vmem:[%s2 + $0x1] sm:$0x1]
  %s37 = sld [smem:[#allocation5]]
  %v38 = vlaneseq
  %v39 = vshrl.u32 %v38, 7
  %v40 = vsub.s32 0, %v39
  %v41 = vrot.slane %v35, %v40
  %v42 = vmul.f32 %v31, %v41
  %v43 = vmul.f32 %v32, %v41
  %v44 = vlaneseq
  %v45 = vshrl.u32 %v44, 7
  %v46 = vsub.s32 0, %v45
  %v47 = vrot.slane %v36, %v46
  %v48 = vmul.f32 %v33, %v47
  %v49 = vmul.f32 %v34, %v47
  %v50 = vadd.f32 %v42, %v48
  %v51 = vadd.f32 %v43, %v49
  %vm52 = vcmask 261120
  %v53 = vsel %vm52, %v50, 0.0
  %54 = vadd.xlane.f32.xlu0 %v53
  %v55 = vpop.xlane.xlu0 %54
  %v56 = vsel %vm52, %v51, 0.0
  %57 = vadd.xlane.f32.xlu0 %v56
  %v58 = vpop.xlane.xlu0 %57
  %v59 = vstv %s37
  %v60 = vadd.f32 %v55, %v59
  %v61 = vadd.f32 %v58, %v59
  %v62 = vld [vmem:[%s4] sm:$0xff]
  %v63 = vld [vmem:[%s4 + $0x8] sm:$0xff]
  %v64 = vlaneseq
  %v65 = vand.u32 %v64, 127
  %s66 = smul.u32 0, 128
  %v67 = vstv %s66
  %v68 = vadd.s32 %v65, %v67
  %69 = vset.pattern.permute.xlu0 0
  %70 = vperm.xlu0 %69, %v62
  %v71 = vpop.permute.xlu0 %70
  %72 = vset.pattern.permute.xlu0 0
  %73 = vperm.xlu0 %72, %v63
  %v74 = vpop.permute.xlu0 %73
  %vm75 = vcmp.eq.s32.totalorder %v71, %v68
  %vm76 = vcmp.eq.s32.totalorder %v74, %v68
  %v77 = vsel %vm75, 1, 0
  %v78 = vsel %vm76, 1, 0
  %v79 = vcvt.s32.f32 %v77
  %v80 = vcvt.s32.f32 %v78
  %vm81 = vcmp.ge.s32.totalorder %v62, 0
  %vm82 = vcmp.ge.s32.totalorder %v63, 0
  %v83 = vsel %vm81, 1, 0
  %v84 = vsel %vm82, 1, 0
  %v85 = vcvt.s32.f32 %v83
  %v86 = vcvt.s32.f32 %v84
  %v87 = vld [vmem:[#allocation2] sm:$0x1]
  %v88 = vsel %vm75, %v60, -1e+30
  %v89 = vsel %vm76, %v61, -1e+30
  %v90 = vmax.f32 %v88, %v89
  %v91 = vrot.slane %v90, 4
  %v92 = vmax.f32 %v90, %v91
  %v93 = vrot.slane %v92, 2
  %v94 = vmax.f32 %v92, %v93
  %v95 = vrot.slane %v94, 1
  %v96 = vmax.f32 %v94, %v95
  %v97 = vmax.f32 %v87, %v96
  %v98 = vsub.f32 %v87, %v97
  %v99 = vmul.f32 %v98, 1.442695
  %v100 = vpow.pop %v99
  %101 = vst [vmem:[#allocation2] sm:$0x1] %v97
  %v103 = vlaneseq
  %v104 = vshrl.u32 %v103, 7
  %v105 = vsub.s32 0, %v104
  %v106 = vrot.slane %v97, %v105
  %v108 = vmul.f32 %v79, %v106
  %v109 = vmul.f32 %v80, %v106
  %110 = vadd.xlane.f32.xlu0 %v108
  %v111 = vpop.xlane.xlu0 %110
  %112 = vadd.xlane.f32.xlu0 %v109
  %v113 = vpop.xlane.xlu0 %112
  %v114 = vsub.f32 %v60, %v111
  %v115 = vsub.f32 %v61, %v113
  %v116 = vmin.f32 %v114, 0.0
  %v117 = vmin.f32 %v115, 0.0
  %v118 = vmul.f32 %v116, 1.442695
  %v119 = vpow.pop %v118
  %v120 = vmul.f32 %v117, 1.442695
  %v121 = vpow.pop %v120
  %v122 = vmul.f32 %v119, %v85
  %v123 = vmul.f32 %v121, %v86
  %125 = vset.pattern.permute.xlu0 0
  %126 = vperm.xlu0 %125, %v122
  %v127 = vpop.permute.xlu0 %126
  %130 = vset.pattern.permute.xlu0 0
  %131 = vperm.xlu0 %130, %v123
  %v132 = vpop.permute.xlu0 %131
  %v134 = vmul.f32 %v31, %v127
  %v135 = vmul.f32 %v32, %v132
  %136 = vxpose.xlu0.b32.start [1/16] %v134, 128
  %137 = vxpose.xlu0.b32.cont [2/16] %v135, 128
  %138 = vxpose.xlu0.b32.cont [3/16] 0.0, 128
  %139 = vxpose.xlu0.b32.cont [4/16] 0.0, 128
  %140 = vxpose.xlu0.b32.cont [5/16] 0.0, 128
  %141 = vxpose.xlu0.b32.cont [6/16] 0.0, 128
  %142 = vxpose.xlu0.b32.cont [7/16] 0.0, 128
  %143 = vxpose.xlu0.b32.cont [8/16] 0.0, 128
  %144 = vxpose.xlu0.b32.cont [9/16] 0.0, 128
  %145 = vxpose.xlu0.b32.cont [10/16] 0.0, 128
  %146 = vxpose.xlu0.b32.cont [11/16] 0.0, 128
  %147 = vxpose.xlu0.b32.cont [12/16] 0.0, 128
  %148 = vxpose.xlu0.b32.cont [13/16] 0.0, 128
  %149 = vxpose.xlu0.b32.cont [14/16] 0.0, 128
  %150 = vxpose.xlu0.b32.cont [15/16] 0.0, 128
  %151 = vxpose.xlu0.b32.end [16/16] 0.0, 128
  %v152 = vpop.trf.xlu0
  %v153 = vpop.trf.xlu0
  %v154 = vpop.trf.xlu0
  %v155 = vpop.trf.xlu0
  %v156 = vpop.trf.xlu0
  %v157 = vpop.trf.xlu0
  %v158 = vpop.trf.xlu0
  %v159 = vpop.trf.xlu0
  %v160 = vpop.trf.xlu0
  %v161 = vpop.trf.xlu0
  %v162 = vpop.trf.xlu0
  %v163 = vpop.trf.xlu0
  %v164 = vpop.trf.xlu0
  %v165 = vpop.trf.xlu0
  %v166 = vpop.trf.xlu0
  %v167 = vpop.trf.xlu0
  %vm168 = vcmask 130048
  %v170 = vsel %vm168, %v152, 0
  %v173 = vsel %vm168, %v153, 0
  %v176 = vsel %vm168, %v154, 0
  %v179 = vsel %vm168, %v155, 0
  %181 = vmatprep.subr.mxu0 0.0
  %182 = vmatpush1.msra.mxu0 %v79
  %183 = vmatprep.subr.mxu0 0.0
  %184 = vmatpush1.msra.mxu0 %v80
  %185 = vmatprep.subr.mxu0 0.0
  %186 = vmatpush1.msra.mxu0 0.0
  %187 = vmatprep.subr.mxu0 0.0
  %188 = vmatpush1.msra.mxu0 0.0
  %189 = vmatprep.subr.mxu0 0.0
  %190 = vmatpush1.msra.mxu0 0.0
  %191 = vmatprep.subr.mxu0 0.0
  %192 = vmatpush1.msra.mxu0 0.0
  %193 = vmatprep.subr.mxu0 0.0
  %194 = vmatpush1.msra.mxu0 0.0
  %195 = vmatprep.subr.mxu0 0.0
  %196 = vmatpush1.msra.mxu0 0.0
  %197 = vmatprep.subr.mxu0 0.0
  %198 = vmatpush1.msra.mxu0 0.0
  %199 = vmatprep.subr.mxu0 0.0
  %200 = vmatpush1.msra.mxu0 0.0
  %201 = vmatprep.subr.mxu0 0.0
  %202 = vmatpush1.msra.mxu0 0.0
  %203 = vmatprep.subr.mxu0 0.0
  %204 = vmatpush1.msra.mxu0 0.0
  %205 = vmatprep.subr.mxu0 0.0
  %206 = vmatpush1.msra.mxu0 0.0
  %207 = vmatprep.subr.mxu0 0.0
  %208 = vmatpush1.msra.mxu0 0.0
  %209 = vmatprep.subr.mxu0 0.0
  %210 = vmatpush1.msra.mxu0 0.0
  %211 = vmatprep.subr.mxu0 0.0
  %212 = vmatpush1.msra.mxu0 0.0
  %213 = vmatprep.subr.mxu0 0.0
  %214 = vmatpush1.msra.mxu0 0.0
  %215 = vmatprep.subr.mxu0 0.0
  %216 = vmatpush1.msra.mxu0 0.0
  %217 = vmatprep.subr.mxu0 0.0
  %218 = vmatpush1.msra.mxu0 0.0
  %219 = vmatprep.subr.mxu0 0.0
  %220 = vmatpush1.msra.mxu0 0.0
  %221 = vmatprep.subr.mxu0 0.0
  %222 = vmatpush1.msra.mxu0 0.0
  %223 = vmatprep.subr.mxu0 0.0
  %224 = vmatpush1.msra.mxu0 0.0
  %225 = vmatprep.subr.mxu0 0.0
  %226 = vmatpush1.msra.mxu0 0.0
  %227 = vmatprep.subr.mxu0 0.0
  %228 = vmatpush1.msra.mxu0 0.0
  %229 = vmatprep.subr.mxu0 0.0
  %230 = vmatpush1.msra.mxu0 0.0
  %231 = vmatprep.subr.mxu0 0.0
  %232 = vmatpush1.msra.mxu0 0.0
  %233 = vmatprep.subr.mxu0 0.0
  %234 = vmatpush1.msra.mxu0 0.0
  %235 = vmatprep.subr.mxu0 0.0
  %236 = vmatpush1.msra.mxu0 0.0
  %237 = vmatprep.subr.mxu0 0.0
  %238 = vmatpush1.msra.mxu0 0.0
  %239 = vmatprep.subr.mxu0 0.0
  %240 = vmatpush1.msra.mxu0 0.0
  %241 = vmatprep.subr.mxu0 0.0
  %242 = vmatpush1.msra.mxu0 0.0
  %243 = vmatprep.subr.mxu0 0.0
  %244 = vmatpush1.msra.mxu0 0.0
  %245 = vmatprep.mubr.f32.mxu0 0.0
  %246 = vmatmul.mubr.f32.gmra.mrb[0].mxu0 %v170
  %v247 = vpop.f32.mrb[0].mxu0
  %v248 = vadd.f32 0.0, %v247
  %v249 = vpop.f32.mrb[0].mxu0
  %250 = vmatprep.mubr.f32.mxu0 0.0
  %251 = vmatmul.mubr.f32.gmra.mrb[0].mxu0 %v173
  %v252 = vpop.f32.mrb[0].mxu0
  %v253 = vadd.f32 0.0, %v252
  %v254 = vpop.f32.mrb[0].mxu0
  %255 = vmatprep.mubr.f32.mxu0 0.0
  %256 = vmatmul.mubr.f32.gmra.mrb[0].mxu0 %v176
  %v257 = vpop.f32.mrb[0].mxu0
  %v258 = vadd.f32 0.0, %v257
  %v259 = vpop.f32.mrb[0].mxu0
  %260 = vmatprep.mubr.f32.mxu0 0.0
  %261 = vmatmul.mubr.f32.gmra.mrb[0].mxu0 %v179
  %v262 = vpop.f32.mrb[0].mxu0
  %v263 = vadd.f32 0.0, %v262
  %v264 = vpop.f32.mrb[0].mxu0
  %265 = vdwg.mxu0
  %266 = vxpose.xlu0.b32.start [1/16] %v122, 128
  %267 = vxpose.xlu0.b32.cont [2/16] %v123, 128
  %268 = vxpose.xlu0.b32.cont [3/16] 0.0, 128
  %269 = vxpose.xlu0.b32.cont [4/16] 0.0, 128
  %270 = vxpose.xlu0.b32.cont [5/16] 0.0, 128
  %271 = vxpose.xlu0.b32.cont [6/16] 0.0, 128
  %272 = vxpose.xlu0.b32.cont [7/16] 0.0, 128
  %273 = vxpose.xlu0.b32.cont [8/16] 0.0, 128
  %274 = vxpose.xlu0.b32.cont [9/16] 0.0, 128
  %275 = vxpose.xlu0.b32.cont [10/16] 0.0, 128
  %276 = vxpose.xlu0.b32.cont [11/16] 0.0, 128
  %277 = vxpose.xlu0.b32.cont [12/16] 0.0, 128
  %278 = vxpose.xlu0.b32.cont [13/16] 0.0, 128
  %279 = vxpose.xlu0.b32.cont [14/16] 0.0, 128
  %280 = vxpose.xlu0.b32.cont [15/16] 0.0, 128
  %281 = vxpose.xlu0.b32.end [16/16] 0.0, 128
  %v282 = vpop.trf.xlu0
  %v283 = vpop.trf.xlu0
  %v284 = vpop.trf.xlu0
  %v285 = vpop.trf.xlu0
  %v286 = vpop.trf.xlu0
  %v287 = vpop.trf.xlu0
  %v288 = vpop.trf.xlu0
  %v289 = vpop.trf.xlu0
  %v290 = vpop.trf.xlu0
  %v291 = vpop.trf.xlu0
  %v292 = vpop.trf.xlu0
  %v293 = vpop.trf.xlu0
  %v294 = vpop.trf.xlu0
  %v295 = vpop.trf.xlu0
  %v296 = vpop.trf.xlu0
  %v297 = vpop.trf.xlu0
  %v299 = vsel %vm168, %v282, 0
  %301 = vmatprep.subr.mxu0 0.0
  %302 = vmatpush1.msra.mxu0 %v79
  %303 = vmatprep.subr.mxu0 0.0
  %304 = vmatpush1.msra.mxu0 %v80
  %305 = vmatprep.subr.mxu0 0.0
  %306 = vmatpush1.msra.mxu0 0.0
  %307 = vmatprep.subr.mxu0 0.0
  %308 = vmatpush1.msra.mxu0 0.0
  %309 = vmatprep.subr.mxu0 0.0
  %310 = vmatpush1.msra.mxu0 0.0
  %311 = vmatprep.subr.mxu0 0.0
  %312 = vmatpush1.msra.mxu0 0.0
  %313 = vmatprep.subr.mxu0 0.0
  %314 = vmatpush1.msra.mxu0 0.0
  %315 = vmatprep.subr.mxu0 0.0
  %316 = vmatpush1.msra.mxu0 0.0
  %317 = vmatprep.subr.mxu0 0.0
  %318 = vmatpush1.msra.mxu0 0.0
  %319 = vmatprep.subr.mxu0 0.0
  %320 = vmatpush1.msra.mxu0 0.0
  %321 = vmatprep.subr.mxu0 0.0
  %322 = vmatpush1.msra.mxu0 0.0
  %323 = vmatprep.subr.mxu0 0.0
  %324 = vmatpush1.msra.mxu0 0.0
  %325 = vmatprep.subr.mxu0 0.0
  %326 = vmatpush1.msra.mxu0 0.0
  %327 = vmatprep.subr.mxu0 0.0
  %328 = vmatpush1.msra.mxu0 0.0
  %329 = vmatprep.subr.mxu0 0.0
  %330 = vmatpush1.msra.mxu0 0.0
  %331 = vmatprep.subr.mxu0 0.0
  %332 = vmatpush1.msra.mxu0 0.0
  %333 = vmatprep.subr.mxu0 0.0
  %334 = vmatpush1.msra.mxu0 0.0
  %335 = vmatprep.subr.mxu0 0.0
  %336 = vmatpush1.msra.mxu0 0.0
  %337 = vmatprep.subr.mxu0 0.0
  %338 = vmatpush1.msra.mxu0 0.0
  %339 = vmatprep.subr.mxu0 0.0
  %340 = vmatpush1.msra.mxu0 0.0
  %341 = vmatprep.subr.mxu0 0.0
  %342 = vmatpush1.msra.mxu0 0.0
  %343 = vmatprep.subr.mxu0 0.0
  %344 = vmatpush1.msra.mxu0 0.0
  %345 = vmatprep.subr.mxu0 0.0
  %346 = vmatpush1.msra.mxu0 0.0
  %347 = vmatprep.subr.mxu0 0.0
  %348 = vmatpush1.msra.mxu0 0.0
  %349 = vmatprep.subr.mxu0 0.0
  %350 = vmatpush1.msra.mxu0 0.0
  %351 = vmatprep.subr.mxu0 0.0
  %352 = vmatpush1.msra.mxu0 0.0
  %353 = vmatprep.subr.mxu0 0.0
  %354 = vmatpush1.msra.mxu0 0.0
  %355 = vmatprep.subr.mxu0 0.0
  %356 = vmatpush1.msra.mxu0 0.0
  %357 = vmatprep.subr.mxu0 0.0
  %358 = vmatpush1.msra.mxu0 0.0
  %359 = vmatprep.subr.mxu0 0.0
  %360 = vmatpush1.msra.mxu0 0.0
  %361 = vmatprep.subr.mxu0 0.0
  %362 = vmatpush1.msra.mxu0 0.0
  %363 = vmatprep.subr.mxu0 0.0
  %364 = vmatpush1.msra.mxu0 0.0
  %365 = vmatprep.mubr.f32.mxu0 0.0
  %366 = vmatmul.mubr.f32.gmra.mrb[0].mxu0 %v299
  %v367 = vpop.f32.mrb[0].mxu0
  %v368 = vadd.f32 0.0, %v367
  %v369 = vpop.f32.mrb[0].mxu0
  %370 = vdwg.mxu0
  %v371 = vld [vmem:[#allocation4] sm:$0xff]
  %v372 = vld [vmem:[#allocation4 + $0x8] sm:$0xff]
  %v373 = vld [vmem:[#allocation4 + $0x10] sm:$0xff]
  %v374 = vld [vmem:[#allocation4 + $0x18] sm:$0xff]
  %v376 = vlaneseq
  %v377 = vshrl.u32 %v376, 7
  %v378 = vsub.s32 0, %v377
  %v379 = vrot.slane %v100, %v378
  %v381 = vmul.f32 %v379, %v371
  %v382 = vmul.f32 %v379, %v372
  %v383 = vmul.f32 %v379, %v373
  %v384 = vmul.f32 %v379, %v374
  %v385 = vadd.f32 %v381, %v248
  %v386 = vadd.f32 %v382, %v253
  %v387 = vadd.f32 %v383, %v258
  %v388 = vadd.f32 %v384, %v263
  %389 = vst [vmem:[#allocation4] sm:$0xff] %v385
  %390 = vst [vmem:[#allocation4 + $0x8] sm:$0xff] %v386
  %391 = vst [vmem:[#allocation4 + $0x10] sm:$0xff] %v387
  %392 = vst [vmem:[#allocation4 + $0x18] sm:$0xff] %v388
  %v393 = vld [vmem:[#allocation3] sm:$0x1]
  %v394 = vmul.f32 %v100, %v393
  %v395 = vadd.f32 %v394, %v368
  %396 = vst [vmem:[#allocation3] sm:$0x1] %v395
  // Predicated region
  $region26: #{global_attention_pool.1} parent=0 // pred_check
    %p397 = pneg %p21
  $region27: #{global_attention_pool.1} parent=0 // pred_check_branch
    %399 = sbr.rel (%p397) target = $region29
  $region28: #{global_attention_pool.1} parent=0 // pred_region
    %v400 = vld [vmem:[#allocation3] sm:$0x1]
    %v401 = vadd.f32 %v400, 1e-16
    %v402 = vrcp.pop %v401
    %v403 = vmul.f32 %v401, %v402
    %v404 = vsub.f32 2.0, %v403
    %v405 = vmul.f32 %v402, %v404
    %v406 = vld [vmem:[#allocation4] sm:$0xff]
    %v407 = vld [vmem:[#allocation4 + $0x8] sm:$0xff]
    %v408 = vld [vmem:[#allocation4 + $0x10] sm:$0xff]
    %v409 = vld [vmem:[#allocation4 + $0x18] sm:$0xff]
    %v411 = vlaneseq
    %v412 = vshrl.u32 %v411, 7
    %v413 = vsub.s32 0, %v412
    %v414 = vrot.slane %v405, %v413
    %v416 = vmul.f32 %v406, %v414
    %v417 = vmul.f32 %v407, %v414
    %v418 = vmul.f32 %v408, %v414
    %v419 = vmul.f32 %v409, %v414
    %420 = vst [vmem:[%s5] sm:$0xff] %v416
    %421 = vst [vmem:[%s5 + $0x8] sm:$0xff] %v417
    %422 = vst [vmem:[%s5 + $0x10] sm:$0xff] %v418
    %423 = vst [vmem:[%s5 + $0x18] sm:$0xff] %v419
  $region29: #{global_attention_pool.1} parent=0 // pred_fallthru
    _
  // Predicated region
  $region30: #{global_attention_pool.1} parent=0 // pred_check
    _
  $region31: #{global_attention_pool.1} parent=0 // pred_check_branch
    %425 = sbr.rel (0) target = $region33
  $region32: #{global_attention_pool.1} parent=0 // pred_region
    _
  $region33: #{global_attention_pool.1} parent=0 // pred_fallthru
    _
  // Predicated region
  $region34: #{global_attention_pool.1} parent=0 // pred_check
    _
  $region35: #{global_attention_pool.1} parent=0 // pred_check_branch
    %427 = sbr.rel (0) target = $region37
  $region36: #{global_attention_pool.1} parent=0 // pred_region
    _
  $region37: #{global_attention_pool.1} parent=0 // pred_fallthru
    _

</llo_original>
